<compile_context>
chip_gen: v5e
topology: v5e:2x2
jax: 0.10.0
libtpu: 0.0.40
codegen_flags: <defaults>
</compile_context>

<pallas_src>
import functools

import jax
import jax.numpy as jnp
import numpy as np
from jax.experimental import pallas as pl
from jax.experimental.pallas import tpu as pltpu


def _round_up(x, m):
    return ((x + m - 1) // m) * m


def _rpn_kernel(x_ref, wt_ref, b_ref, out_ref, *, n_reg, n_out):
    # x_ref:   (C_in, hw_tile)  input dtype (f32 here)
    # wt_ref:  (C_pad, C_in)    bf16  (fused, transposed, channel-padded weight)
    # b_ref:   (C_pad, 1)       f32   (fused bias, channel-padded)
    # out_ref: (C_pad, hw_tile) f32   rows [0,n_reg) = reg, [n_reg,n_out) = cls
    x_bf16 = x_ref[...].astype(jnp.bfloat16)          # bf16 MXU operand, f32 acc
    y = jnp.dot(wt_ref[...], x_bf16,
                preferred_element_type=jnp.float32)
    y = y + b_ref[...]                                 # f32 epilogue (bias)
    # Apply sigmoid only to the cls rows; padding rows (>= n_out) are sliced
    # off in the wrapper so their value is irrelevant.
    row = jax.lax.broadcasted_iota(jnp.int32, y.shape, 0)
    is_cls = jnp.logical_and(row >= n_reg, row < n_out)
    out_ref[...] = jnp.where(is_cls, jax.nn.sigmoid(y), y)


@functools.partial(jax.jit, static_argnames=("t_hw",))
def rpn_forward(x_nchw, w1, b1, wr, br, wc, bc, *, t_hw=512):
    """x_nchw: (N, C_in, H, W). Weights stored as (C_in, C_out); biases (C_out,)."""
    N, C_in, H, W = x_nchw.shape
    C_reg = wr.shape[1]
    C_cls = wc.shape[1]
    C_out = C_reg + C_cls
    C_pad = _round_up(C_out, 16)        # sublane/bf16-packing friendly (45 -> 48)

    # ---- Fold conv1 into the two heads (valid: no activation after conv1) ----
    W_all = jnp.concatenate([wr, wc], axis=1)                # (C_in, C_out)
    W_fused = w1 @ W_all                                     # (C_in, C_out) f32
    b_fused = b1 @ W_all + jnp.concatenate([br, bc])         # (C_out,)

    # Transposed, channel-padded weight so output channels land on sublanes.
    Wt = jnp.zeros((C_pad, C_in), jnp.float32).at[:C_out].set(W_fused.T)
    Wt = Wt.astype(jnp.bfloat16)                             # 48 KiB resident
    b_col = jnp.zeros((C_pad, 1), jnp.float32).at[:C_out, 0].set(b_fused)

    # ---- Stay in NCHW: flatten H*W onto the lane axis ----
    HW = H * W
    hw_tile = max(128, min(t_hw, _round_up(HW, 128)))
    HWp = _round_up(HW, hw_tile)
    x3 = x_nchw.reshape(N, C_in, HW)
    if HWp != HW:
        x3 = jnp.pad(x3, ((0, 0), (0, 0), (0, HWp - HW)))

    grid = (N, HWp // hw_tile)

    out = pl.pallas_call(
        functools.partial(_rpn_kernel, n_reg=C_reg, n_out=C_out),
        out_shape=jax.ShapeDtypeStruct((N, C_pad, HWp), jnp.float32),
        grid_spec=pltpu.PrefetchScalarGridSpec(
            num_scalar_prefetch=0,
            grid=grid,
            in_specs=[
                # x tile: (C_in, hw_tile), batch dim squeezed out
                pl.BlockSpec((None, C_in, hw_tile), lambda n, j: (n, 0, j)),
                # fused weight / bias: constant blocks
                pl.BlockSpec((C_pad, C_in), lambda n, j: (0, 0)),
                pl.BlockSpec((C_pad, 1), lambda n, j: (0, 0)),
            ],
            out_specs=pl.BlockSpec((None, C_pad, hw_tile),
                                   lambda n, j: (n, 0, j)),
        ),
        compiler_params=pltpu.CompilerParams(
            dimension_semantics=("parallel", "parallel")),
    )(x3, Wt, b_col)

    # Slice off spatial + channel padding; outputs are already NCHW-ordered.
    out = out[:, :, :HW]
    pred_anchor_locs = out[:, :C_reg, :].reshape(N, C_reg, H, W)
    pred_cls_scores = out[:, C_reg:C_out, :].reshape(N, C_cls, H, W)
    return pred_anchor_locs, pred_cls_scores


def init_rpn_params(key, in_channels=512, out_channels=512, num_anchors=9):
    """Matches RPN.__init__: weights ~ N(0, 0.01), biases zero.

    PyTorch conv weight shape is (C_out, C_in, 1, 1); we store the equivalent
    (C_in, C_out) matrix for the 1x1-conv-as-matmul formulation.
    """
    k1, k2, k3 = jax.random.split(key, 3)
    w1 = 0.01 * jax.random.normal(k1, (in_channels, out_channels), jnp.float32)
    b1 = jnp.zeros((out_channels,), jnp.float32)
    wr = 0.01 * jax.random.normal(k2, (out_channels, num_anchors * 4), jnp.float32)
    br = jnp.zeros((num_anchors * 4,), jnp.float32)
    wc = 0.01 * jax.random.normal(k3, (out_channels, num_anchors * 1), jnp.float32)
    bc = jnp.zeros((num_anchors * 1,), jnp.float32)
    return w1, b1, wr, br, wc, bc


def _reference(x_nchw, w1, b1, wr, br, wc, bc):
    """Pure-JAX f32 reference of the PyTorch forward (for correctness check)."""
    N, C_in, H, W = x_nchw.shape
    x2d = jnp.transpose(x_nchw, (0, 2, 3, 1)).reshape(-1, C_in)
    h = x2d @ w1 + b1
    reg = h @ wr + br
    cls = jax.nn.sigmoid(h @ wc + bc)
    reg = jnp.transpose(reg.reshape(N, H, W, -1), (0, 3, 1, 2))
    cls = jnp.transpose(cls.reshape(N, H, W, -1), (0, 3, 1, 2))
    return reg, cls


if __name__ == "__main__":
    key = jax.random.PRNGKey(0)
    k_in, k_params = jax.random.split(key)

    # The module fixes C_in = 512; keep spatial/batch small.
    N, C_in, H, W = 2, 512, 8, 8
    num_anchors = 9

    x = jax.random.normal(k_in, (N, C_in, H, W), jnp.float32)
    params = init_rpn_params(k_params, in_channels=C_in,
                             out_channels=512, num_anchors=num_anchors)

    pred_anchor_locs, pred_cls_scores = rpn_forward(x, *params)
    jax.block_until_ready((pred_anchor_locs, pred_cls_scores))

    assert pred_anchor_locs.shape == (N, num_anchors * 4, H, W)
    assert pred_cls_scores.shape == (N, num_anchors * 1, H, W)

    ref_reg, ref_cls = _reference(x, *params)
    # bf16 MXU operands (f32 accumulate) -> relaxed tolerance vs f32 reference.
    np.testing.assert_allclose(np.asarray(pred_anchor_locs),
                               np.asarray(ref_reg), rtol=5e-2, atol=5e-3)
    np.testing.assert_allclose(np.asarray(pred_cls_scores),
                               np.asarray(ref_cls), rtol=5e-2, atol=5e-3)

    print("KERNEL_OK")
</pallas_src>

<mosaic_0001>
module attributes {stable_mosaic.version = 11 : i64} {
  func.func @_rpn_kernel(%arg0: i32, %arg1: i32, %arg2: memref<1x512x128xf32, #tpu.memory_space<vmem>>, %arg3: memref<48x512xbf16, #tpu.memory_space<vmem>>, %arg4: memref<48x1xf32, #tpu.memory_space<vmem>>, %arg5: memref<1x48x128xf32, #tpu.memory_space<vmem>>) attributes {dimension_semantics = [#tpu.dimension_semantics<parallel>, #tpu.dimension_semantics<parallel>], iteration_bounds = array<i64: 2, 1>, scalar_prefetch = 0 : i64, scratch_operands = 0 : i64, tpu.core_type = #tpu.core_type<tc>, window_params = [{transform_indices = @transform_0, window_bounds = array<i64: 1, 512, 128>}, {pipeline_mode = #tpu.pipeline_mode<synchronous>, transform_indices = @transform_1, window_bounds = array<i64: 48, 512>}, {pipeline_mode = #tpu.pipeline_mode<synchronous>, transform_indices = @transform_2, window_bounds = array<i64: 48, 1>}, {transform_indices = @transform_3, window_bounds = array<i64: 1, 48, 128>}]} {
    %c0 = arith.constant 0 : index
    %c0_0 = arith.constant 0 : index
    %c0_1 = arith.constant 0 : index
    %0 = vector.load %arg2[%c0, %c0_0, %c0_1] : memref<1x512x128xf32, #tpu.memory_space<vmem>>, vector<1x512x128xf32>
    %1 = vector.shape_cast %0 : vector<1x512x128xf32> to vector<512x128xf32>
    %2 = arith.truncf %1 : vector<512x128xf32> to vector<512x128xbf16>
    %c0_2 = arith.constant 0 : index
    %c0_3 = arith.constant 0 : index
    %3 = vector.load %arg3[%c0_2, %c0_3] : memref<48x512xbf16, #tpu.memory_space<vmem>>, vector<48x512xbf16>
    %cst = arith.constant dense<0.000000e+00> : vector<48x128xf32>
    %4 = tpu.matmul %3, %2, %cst {dimension_numbers = #tpu.dot_dimension_numbers<[1], [0], [0], [1], [0, 0, 1, 1], [], []>} : vector<48x512xbf16>, vector<512x128xbf16>, vector<48x128xf32> -> vector<48x128xf32>
    %c0_4 = arith.constant 0 : index
    %c0_5 = arith.constant 0 : index
    %5 = vector.load %arg4[%c0_4, %c0_5] : memref<48x1xf32, #tpu.memory_space<vmem>>, vector<48x1xf32>
    %6 = vector.broadcast %5 : vector<48x1xf32> to vector<48x128xf32>
    %7 = arith.addf %4, %6 : vector<48x128xf32>
    %8 = tpu.iota {dimensions = array<i32: 0>} : vector<48x128xi32>
    %c36_i32 = arith.constant 36 : i32
    %9 = vector.broadcast %c36_i32 : i32 to vector<48x128xi32>
    %10 = arith.cmpi sge, %8, %9 : vector<48x128xi32>
    %c45_i32 = arith.constant 45 : i32
    %11 = vector.broadcast %c45_i32 : i32 to vector<48x128xi32>
    %12 = arith.cmpi slt, %8, %11 : vector<48x128xi32>
    %13 = arith.andi %10, %12 : vector<48x128xi1>
    %14 = arith.negf %7 : vector<48x128xf32>
    %15 = math.exp %14 : vector<48x128xf32>
    %cst_6 = arith.constant 1.000000e+00 : f32
    %16 = vector.broadcast %cst_6 : f32 to vector<48x128xf32>
    %17 = arith.addf %16, %15 : vector<48x128xf32>
    %18 = arith.divf %16, %17 : vector<48x128xf32>
    %19 = arith.select %13, %18, %7 : vector<48x128xi1>, vector<48x128xf32>
    %c0_7 = arith.constant 0 : index
    %c0_8 = arith.constant 0 : index
    %c0_9 = arith.constant 0 : index
    %20 = vector.load %arg5[%c0_7, %c0_8, %c0_9] : memref<1x48x128xf32, #tpu.memory_space<vmem>>, vector<1x48x128xf32>
    %21 = vector.shape_cast %20 : vector<1x48x128xf32> to vector<48x128xf32>
    %22 = vector.shape_cast %19 : vector<48x128xf32> to vector<1x48x128xf32>
    tpu.vector_store %arg5[%c0_7, %c0_8, %c0_9], %22 {strides = array<i32>} : memref<1x48x128xf32, #tpu.memory_space<vmem>>, vector<1x48x128xf32>,
    return
  }
  func.func @transform_0(%arg0: i32, %arg1: i32) -> (i32, i32, i32) {
    %c0_i32 = arith.constant 0 : i32
    %c0_i32_0 = arith.constant 0 : i32
    return %arg0, %c0_i32, %arg1 : i32, i32, i32
  }
  func.func @transform_1(%arg0: i32, %arg1: i32) -> (i32, i32) {
    %c0_i32 = arith.constant 0 : i32
    %c0_i32_0 = arith.constant 0 : i32
    %c0_i32_1 = arith.constant 0 : i32
    return %c0_i32, %c0_i32_0 : i32, i32
  }
  func.func @transform_2(%arg0: i32, %arg1: i32) -> (i32, i32) {
    %c0_i32 = arith.constant 0 : i32
    %c0_i32_0 = arith.constant 0 : i32
    %c0_i32_1 = arith.constant 0 : i32
    return %c0_i32, %c0_i32_0 : i32, i32
  }
  func.func @transform_3(%arg0: i32, %arg1: i32) -> (i32, i32, i32) {
    %c0_i32 = arith.constant 0 : i32
    %c0_i32_0 = arith.constant 0 : i32
    return %arg0, %c0_i32, %arg1 : i32, i32, i32
  }
}

</mosaic_0001>

<llo_original>
// kernel: rpn_forward.1
$region0: #{rpn_forward.1}
  #allocation0 [shape = 'u32[]', space=smem, size = 0x4, offset = 0x4, fixed_abs, tag = 'smem constant byte address 0x4 - core index']
  #allocation1 [shape = 'u32[72,128]{1,0:T(1,128)}', space=vmem, size = 0x9000, scoped, tag = 'internal scratch']
  %s0 = inlined_call_operand.vmem [shape: f32[2,512,128], index: 0, kind: input, shape index: {}]
  %s1 = inlined_call_operand.vmem [shape: bf16[48,512], index: 1, kind: input, shape index: {}]
  %s2 = inlined_call_operand.vmem [shape: f32[48,1], index: 2, kind: input, shape index: {}]
  %s3 = inlined_call_operand.vmem [shape: f32[2,48,128], index: 3, kind: output, shape index: {}]
  %s4 = sld [smem:[#allocation0]]
  $region45: #{rpn_forward.1} parent=0
    _
  %s6 = ssub.s32 1, %s4
  %s7 = scalar_select 0, %s6, %s4
  loop: start=0, step=1, limit=4
  $region2: #{rpn_forward.1} parent=0 // loop_pre_header
    _
  $region3: #{rpn_forward.1} parent=0 // loop_header
    %s9 = sphi 0, %s13
    %p10 = scmp.ge.s32.totalorder %s9, 4
    %s16 = sphi 0, %s28
    %s17 = sphi 0, %s24
    %s18 = sphi 0, %s16
    %s19 = sphi 0, %s17
    %s20 = sphi 0, %s18
    %s21 = sphi 0, %s19
    %s33 = sphi 0, %s35
    %s36 = sphi 0, %s33
    %s37 = sphi 0, %s36
    %s53 = sphi 0, %s37
    %s57 = sphi 0, %s57
    %s59 = sphi 0, %s57
    %s60 = sphi 0, %s59
    %s74 = sphi 0, %s60
    %s78 = sphi 0, %s78
    %s80 = sphi 0, %s78
    %s81 = sphi 0, %s80
    %s95 = sphi 0, %s81
    %s103 = sphi 0, %s105
    %s106 = sphi 0, %s103
    %s107 = sphi 0, %s106
    %s123 = sphi 0, %s107
  $region4: #{rpn_forward.1} parent=0 // loop_header_branch
    %12 = sbr.rel (%p10) target = $region8
  $region5: #{rpn_forward.1} parent=0 // loop_body
    %s14 = ssub.s32 %s9, 1
    %s15 = ssub.s32 %s9, 2
    %s22 = sadd.s32 1, %s17
    %p23 = scmp.ge.s32.totalorder %s22, 1
    %s24 = scalar_select %p23, 0, %s22
    %s25 = sadd.s32 1, %s16
    %s26 = scalar_select %p23, %s25, %s16
    %p27 = scmp.ge.s32.totalorder %s26, 2
    %s28 = scalar_select %p27, 0, %s26
    %s29 = ssub.s32 %s16, %s28
    %s30 = ssub.s32 %s17, %s24
    %s31 = sor.u32 %s29, %s30
    %p32 = scmp.eq.s32.totalorder %s31, 0
    %s34 = sadd.s32 %s33, 1
    %s35 = scalar_select %p32, %s33, %s34
    %p38 = pneg %p32
    %p39 = scmp.eq.s32.totalorder %s9, 1
    %p40 = por %p38, %p39
    %p41 = scmp.ne.s32.totalorder %s33, %s36
    %p42 = scmp.eq.s32.totalorder %s9, 0
    %p43 = por %p41, %p42
    %p44 = scmp.ne.s32.totalorder %s33, %s36
    %p45 = scmp.eq.s32.totalorder %s14, 1
    %p46 = por %p44, %p45
    %p47 = scmp.ne.s32.totalorder %s36, %s37
    %p48 = scmp.eq.s32.totalorder %s14, 0
    %p49 = por %p47, %p48
    %p50 = scmp.ne.s32.totalorder %s36, %s37
    %p51 = scmp.eq.s32.totalorder %s15, 1
    %p52 = por %p50, %p51
    %p54 = scmp.ne.s32.totalorder %s37, %s53
    %p55 = scmp.eq.s32.totalorder %s15, 0
    %p56 = por %p54, %p55
    %s58 = sadd.s32 %s57, 1
    %p61 = scmp.eq.s32.totalorder %s9, 1
    %p62 = scmp.ne.s32.totalorder %s57, %s59
    %p63 = scmp.eq.s32.totalorder %s9, 0
    %p64 = por %p62, %p63
    %p65 = scmp.ne.s32.totalorder %s57, %s59
    %p66 = scmp.eq.s32.totalorder %s14, 1
    %p67 = por %p65, %p66
    %p68 = scmp.ne.s32.totalorder %s59, %s60
    %p69 = scmp.eq.s32.totalorder %s14, 0
    %p70 = por %p68, %p69
    %p71 = scmp.ne.s32.totalorder %s59, %s60
    %p72 = scmp.eq.s32.totalorder %s15, 1
    %p73 = por %p71, %p72
    %p75 = scmp.ne.s32.totalorder %s60, %s74
    %p76 = scmp.eq.s32.totalorder %s15, 0
    %p77 = por %p75, %p76
    %s79 = sadd.s32 %s78, 1
    %p82 = scmp.eq.s32.totalorder %s9, 1
    %p83 = scmp.ne.s32.totalorder %s78, %s80
    %p84 = scmp.eq.s32.totalorder %s9, 0
    %p85 = por %p83, %p84
    %p86 = scmp.ne.s32.totalorder %s78, %s80
    %p87 = scmp.eq.s32.totalorder %s14, 1
    %p88 = por %p86, %p87
    %p89 = scmp.ne.s32.totalorder %s80, %s81
    %p90 = scmp.eq.s32.totalorder %s14, 0
    %p91 = por %p89, %p90
    %p92 = scmp.ne.s32.totalorder %s80, %s81
    %p93 = scmp.eq.s32.totalorder %s15, 1
    %p94 = por %p92, %p93
    %p96 = scmp.ne.s32.totalorder %s81, %s95
    %p97 = scmp.eq.s32.totalorder %s15, 0
    %p98 = por %p96, %p97
    %s99 = ssub.s32 %s16, %s28
    %s100 = ssub.s32 %s17, %s24
    %s101 = sor.u32 %s99, %s100
    %p102 = scmp.eq.s32.totalorder %s101, 0
    %s104 = sadd.s32 %s103, 1
    %s105 = scalar_select %p102, %s103, %s104
    %p108 = pneg %p102
    %p109 = scmp.eq.s32.totalorder %s9, 1
    %p110 = por %p108, %p109
    %p111 = scmp.ne.s32.totalorder %s103, %s106
    %p112 = scmp.eq.s32.totalorder %s9, 0
    %p113 = por %p111, %p112
    %p114 = scmp.ne.s32.totalorder %s103, %s106
    %p115 = scmp.eq.s32.totalorder %s14, 1
    %p116 = por %p114, %p115
    %p117 = scmp.ne.s32.totalorder %s106, %s107
    %p118 = scmp.eq.s32.totalorder %s14, 0
    %p119 = por %p117, %p118
    %p120 = scmp.ne.s32.totalorder %s106, %s107
    %p121 = scmp.eq.s32.totalorder %s15, 1
    %p122 = por %p120, %p121
    %p124 = scmp.ne.s32.totalorder %s107, %s123
    %p125 = scmp.eq.s32.totalorder %s15, 0
    %p126 = por %p124, %p125
    %p127 = scmp.le.s32.totalorder 1, %s9
    %p128 = scmp.lt.s32.totalorder %s9, 3
    %p129 = pnand %p127, %p128
    %p130 = pneg %p129
    // Predicated region
    $region9: #{rpn_forward.1} parent=5 // pred_check
      _
    $region10: #{rpn_forward.1} parent=5 // pred_check_branch
      %132 = sbr.rel (%p129) target = $region12
    $region11: #{rpn_forward.1} parent=5 // pred_region
      %s133 = ssub.s32 %s9, 1
      // Predicated region
      $region13: #{rpn_forward.1} parent=11 // pred_check
        %p134 = pneg %p70
      $region14: #{rpn_forward.1} parent=11 // pred_check_branch
        %136 = sbr.rel (%p134) target = $region16
      $region15: #{rpn_forward.1} parent=11 // pred_region
        _
      $region16: #{rpn_forward.1} parent=11 // pred_fallthru
        _
      // Predicated region
      $region17: #{rpn_forward.1} parent=11 // pred_check
        %p137 = pneg %p91
      $region18: #{rpn_forward.1} parent=11 // pred_check_branch
        %139 = sbr.rel (%p137) target = $region20
      $region19: #{rpn_forward.1} parent=11 // pred_region
        _
      $region20: #{rpn_forward.1} parent=11 // pred_fallthru
        _
    $region12: #{rpn_forward.1} parent=5 // pred_fallthru
      _
    %p140 = scmp.lt.s32.totalorder %s9, 2
    // Predicated region
    $region21: #{rpn_forward.1} parent=5 // pred_check
      %p141 = pneg %p140
    $region22: #{rpn_forward.1} parent=5 // pred_check_branch
      %143 = sbr.rel (%p141) target = $region24
    $region23: #{rpn_forward.1} parent=5 // pred_region
      // Predicated region
      $region25: #{rpn_forward.1} parent=23 // pred_check
        %p144 = pneg %p43
      $region26: #{rpn_forward.1} parent=23 // pred_check_branch
        %146 = sbr.rel (%p144) target = $region28
      $region27: #{rpn_forward.1} parent=23 // pred_region
        %p147 = scmp.lt.s32.totalorder %s16, 1
        %s148 = scalar_select %p147, %s16, 1
        %p149 = scmp.lt.s32.totalorder %s17, 0
        %s150 = scalar_select %p149, %s17, 0
        %s151 = smul.addr %s148, 64
        %s152 = sadd.s32 %s150, %s151
        %s153 = smul.addr %s152, 8
        %s154 = scalar_lea.vmem %s0, %s153
      $region28: #{rpn_forward.1} parent=23 // pred_fallthru
        _
    $region24: #{rpn_forward.1} parent=5 // pred_fallthru
      _
    %p155 = scmp.le.s32.totalorder 1, %s9
    %p156 = scmp.lt.s32.totalorder %s9, 3
    %p157 = pnand %p155, %p156
    %p158 = pneg %p157
    // Predicated region
    $region29: #{rpn_forward.1} parent=5 // pred_check
      _
    $region30: #{rpn_forward.1} parent=5 // pred_check_branch
      %160 = sbr.rel (%p157) target = $region32
    $region31: #{rpn_forward.1} parent=5 // pred_region
      %s161 = ssub.s32 %s9, 1
      %p162 = scmp.lt.s32.totalorder %s18, 1
      %s163 = scalar_select %p162, %s18, 1
      %p164 = scmp.lt.s32.totalorder %s19, 0
      %s165 = scalar_select %p164, %s19, 0
      %s166 = smul.addr %s163, 64
      %s167 = sadd.s32 %s165, %s166
      %s168 = smul.addr %s167, 8
      %s169 = scalar_lea.vmem %s0, %s168
      %p170 = pneg %p49
      %p171 = pneg %p46
      %p172 = pneg %p70
      %p173 = pneg %p67
      %p174 = pneg %p91
      %p175 = pneg %p88
      %p176 = pneg %p119
      %p177 = pneg %p116
      %p178 = scmp.lt.s32.totalorder %s18, 1
      %s179 = scalar_select %p178, %s18, 1
      %p180 = scmp.lt.s32.totalorder %s19, 0
      %s181 = scalar_select %p180, %s19, 0
      %s182 = smul.addr %s179, 6
      %s183 = sadd.s32 %s181, %s182
      %s184 = smul.addr %s183, 8
      %s185 = scalar_lea.vmem %s3, %s184
      %p186 = scmp.lt.s32.totalorder %s18, 1
      %s187 = scalar_select %p186, %s18, 1
      %p188 = scmp.lt.s32.totalorder %s19, 0
      %s189 = scalar_select %p188, %s19, 0
      %s190 = smul.addr %s187, 64
      %s191 = sadd.s32 %s189, %s190
      %s192 = smul.addr %s191, 8
      %s193 = scalar_lea.vmem %s0, %s192
      %p194 = scmp.lt.s32.totalorder %s18, 1
      %s195 = scalar_select %p194, %s18, 1
      %p196 = scmp.lt.s32.totalorder %s19, 0
      %s197 = scalar_select %p196, %s19, 0
      %s198 = smul.addr %s195, 6
      %s199 = sadd.s32 %s197, %s198
      %s200 = smul.addr %s199, 8
      %s201 = scalar_lea.vmem %s3, %s200
      %v202 = vld [vmem:[%s193] sm:$0xff]
      %v203 = vld [vmem:[%s193 + $0x8] sm:$0xff]
      %v204 = vld [vmem:[%s193 + $0x10] sm:$0xff]
      %v205 = vld [vmem:[%s193 + $0x18] sm:$0xff]
      %v206 = vld [vmem:[%s193 + $0x20] sm:$0xff]
      %v207 = vld [vmem:[%s193 + $0x28] sm:$0xff]
      %v208 = vld [vmem:[%s193 + $0x30] sm:$0xff]
      %v209 = vld [vmem:[%s193 + $0x38] sm:$0xff]
      %v210 = vld [vmem:[%s193 + $0x40] sm:$0xff]
      %v211 = vld [vmem:[%s193 + $0x48] sm:$0xff]
      %v212 = vld [vmem:[%s193 + $0x50] sm:$0xff]
      %v213 = vld [vmem:[%s193 + $0x58] sm:$0xff]
      %v214 = vld [vmem:[%s193 + $0x60] sm:$0xff]
      %v215 = vld [vmem:[%s193 + $0x68] sm:$0xff]
      %v216 = vld [vmem:[%s193 + $0x70] sm:$0xff]
      %v217 = vld [vmem:[%s193 + $0x78] sm:$0xff]
      %v218 = vld [vmem:[%s193 + $0x80] sm:$0xff]
      %v219 = vld [vmem:[%s193 + $0x88] sm:$0xff]
      %v220 = vld [vmem:[%s193 + $0x90] sm:$0xff]
      %v221 = vld [vmem:[%s193 + $0x98] sm:$0xff]
      %v222 = vld [vmem:[%s193 + $0xa0] sm:$0xff]
      %v223 = vld [vmem:[%s193 + $0xa8] sm:$0xff]
      %v224 = vld [vmem:[%s193 + $0xb0] sm:$0xff]
      %v225 = vld [vmem:[%s193 + $0xb8] sm:$0xff]
      %v226 = vld [vmem:[%s193 + $0xc0] sm:$0xff]
      %v227 = vld [vmem:[%s193 + $0xc8] sm:$0xff]
      %v228 = vld [vmem:[%s193 + $0xd0] sm:$0xff]
      %v229 = vld [vmem:[%s193 + $0xd8] sm:$0xff]
      %v230 = vld [vmem:[%s193 + $0xe0] sm:$0xff]
      %v231 = vld [vmem:[%s193 + $0xe8] sm:$0xff]
      %v232 = vld [vmem:[%s193 + $0xf0] sm:$0xff]
      %v233 = vld [vmem:[%s193 + $0xf8] sm:$0xff]
      %v234 = vld [vmem:[%s193 + $0x100] sm:$0xff]
      %v235 = vld [vmem:[%s193 + $0x108] sm:$0xff]
      %v236 = vld [vmem:[%s193 + $0x110] sm:$0xff]
      %v237 = vld [vmem:[%s193 + $0x118] sm:$0xff]
      %v238 = vld [vmem:[%s193 + $0x120] sm:$0xff]
      %v239 = vld [vmem:[%s193 + $0x128] sm:$0xff]
      %v240 = vld [vmem:[%s193 + $0x130] sm:$0xff]
      %v241 = vld [vmem:[%s193 + $0x138] sm:$0xff]
      %v242 = vld [vmem:[%s193 + $0x140] sm:$0xff]
      %v243 = vld [vmem:[%s193 + $0x148] sm:$0xff]
      %v244 = vld [vmem:[%s193 + $0x150] sm:$0xff]
      %v245 = vld [vmem:[%s193 + $0x158] sm:$0xff]
      %v246 = vld [vmem:[%s193 + $0x160] sm:$0xff]
      %v247 = vld [vmem:[%s193 + $0x168] sm:$0xff]
      %v248 = vld [vmem:[%s193 + $0x170] sm:$0xff]
      %v249 = vld [vmem:[%s193 + $0x178] sm:$0xff]
      %v250 = vld [vmem:[%s193 + $0x180] sm:$0xff]
      %v251 = vld [vmem:[%s193 + $0x188] sm:$0xff]
      %v252 = vld [vmem:[%s193 + $0x190] sm:$0xff]
      %v253 = vld [vmem:[%s193 + $0x198] sm:$0xff]
      %v254 = vld [vmem:[%s193 + $0x1a0] sm:$0xff]
      %v255 = vld [vmem:[%s193 + $0x1a8] sm:$0xff]
      %v256 = vld [vmem:[%s193 + $0x1b0] sm:$0xff]
      %v257 = vld [vmem:[%s193 + $0x1b8] sm:$0xff]
      %v258 = vld [vmem:[%s193 + $0x1c0] sm:$0xff]
      %v259 = vld [vmem:[%s193 + $0x1c8] sm:$0xff]
      %v260 = vld [vmem:[%s193 + $0x1d0] sm:$0xff]
      %v261 = vld [vmem:[%s193 + $0x1d8] sm:$0xff]
      %v262 = vld [vmem:[%s193 + $0x1e0] sm:$0xff]
      %v263 = vld [vmem:[%s193 + $0x1e8] sm:$0xff]
      %v264 = vld [vmem:[%s193 + $0x1f0] sm:$0xff]
      %v265 = vld [vmem:[%s193 + $0x1f8] sm:$0xff]
      %v266 = vpack.c.bf16 %v203, %v202
      %v267 = vpack.c.bf16 %v205, %v204
      %v268 = vpack.c.bf16 %v207, %v206
      %v269 = vpack.c.bf16 %v209, %v208
      %v270 = vpack.c.bf16 %v211, %v210
      %v271 = vpack.c.bf16 %v213, %v212
      %v272 = vpack.c.bf16 %v215, %v214
      %v273 = vpack.c.bf16 %v217, %v216
      %v274 = vpack.c.bf16 %v219, %v218
      %v275 = vpack.c.bf16 %v221, %v220
      %v276 = vpack.c.bf16 %v223, %v222
      %v277 = vpack.c.bf16 %v225, %v224
      %v278 = vpack.c.bf16 %v227, %v226
      %v279 = vpack.c.bf16 %v229, %v228
      %v280 = vpack.c.bf16 %v231, %v230
      %v281 = vpack.c.bf16 %v233, %v232
      %v282 = vpack.c.bf16 %v235, %v234
      %v283 = vpack.c.bf16 %v237, %v236
      %v284 = vpack.c.bf16 %v239, %v238
      %v285 = vpack.c.bf16 %v241, %v240
      %v286 = vpack.c.bf16 %v243, %v242
      %v287 = vpack.c.bf16 %v245, %v244
      %v288 = vpack.c.bf16 %v247, %v246
      %v289 = vpack.c.bf16 %v249, %v248
      %v290 = vpack.c.bf16 %v251, %v250
      %v291 = vpack.c.bf16 %v253, %v252
      %v292 = vpack.c.bf16 %v255, %v254
      %v293 = vpack.c.bf16 %v257, %v256
      %v294 = vpack.c.bf16 %v259, %v258
      %v295 = vpack.c.bf16 %v261, %v260
      %v296 = vpack.c.bf16 %v263, %v262
      %v297 = vpack.c.bf16 %v265, %v264
      %v298 = vld [vmem:[%s1] sm:$0xff]
      %v299 = vld [vmem:[%s1 + $0x8] sm:$0xff]
      %v300 = vld [vmem:[%s1 + $0x10] sm:$0xff]
      %v301 = vld [vmem:[%s1 + $0x18] sm:$0xff]
      %v302 = vld [vmem:[%s1 + $0x20] sm:$0xff]
      %v303 = vld [vmem:[%s1 + $0x28] sm:$0xff]
      %v304 = vld [vmem:[%s1 + $0x30] sm:$0xff]
      %v305 = vld [vmem:[%s1 + $0x38] sm:$0xff]
      %v306 = vld [vmem:[%s1 + $0x40] sm:$0xff]
      %v307 = vld [vmem:[%s1 + $0x48] sm:$0xff]
      %v308 = vld [vmem:[%s1 + $0x50] sm:$0xff]
      %v309 = vld [vmem:[%s1 + $0x58] sm:$0xff]
      %v310 = vld [vmem:[%s2] sm:$0xff]
      %v311 = vld [vmem:[%s2 + $0x8] sm:$0xff]
      %v312 = vld [vmem:[%s2 + $0x10] sm:$0xff]
      %v313 = vld [vmem:[%s2 + $0x18] sm:$0xff]
      %v314 = vld [vmem:[%s2 + $0x20] sm:$0xff]
      %v315 = vld [vmem:[%s2 + $0x28] sm:$0xff]
      %317 = vset.pattern.permute.xlu0 0
      %318 = vperm.xlu0 %317, %v310
      %v319 = vpop.permute.xlu0 %318
      %322 = vset.pattern.permute.xlu0 0
      %323 = vperm.xlu0 %322, %v311
      %v324 = vpop.permute.xlu0 %323
      %327 = vset.pattern.permute.xlu0 0
      %328 = vperm.xlu0 %327, %v312
      %v329 = vpop.permute.xlu0 %328
      %332 = vset.pattern.permute.xlu0 0
      %333 = vperm.xlu0 %332, %v313
      %v334 = vpop.permute.xlu0 %333
      %337 = vset.pattern.permute.xlu0 0
      %338 = vperm.xlu0 %337, %v314
      %v339 = vpop.permute.xlu0 %338
      %342 = vset.pattern.permute.xlu0 0
      %343 = vperm.xlu0 %342, %v315
      %v344 = vpop.permute.xlu0 %343
      %v358 = vunpack.c.l.b16 %v298
      %v359 = vunpack.c.h.b16 %v298
      %v360 = vunpack.c.l.b16 %v299
      %v361 = vunpack.c.h.b16 %v299
      %v362 = vunpack.c.l.b16 %v300
      %v363 = vunpack.c.h.b16 %v300
      %v364 = vunpack.c.l.b16 %v301
      %v365 = vunpack.c.h.b16 %v301
      %v366 = vunpack.c.l.b16 %v302
      %v367 = vunpack.c.h.b16 %v302
      %v368 = vunpack.c.l.b16 %v303
      %v369 = vunpack.c.h.b16 %v303
      %v370 = vunpack.c.l.b16 %v304
      %v371 = vunpack.c.h.b16 %v304
      %v372 = vunpack.c.l.b16 %v305
      %v373 = vunpack.c.h.b16 %v305
      %v374 = vunpack.c.l.b16 %v306
      %v375 = vunpack.c.h.b16 %v306
      %v376 = vunpack.c.l.b16 %v307
      %v377 = vunpack.c.h.b16 %v307
      %v378 = vunpack.c.l.b16 %v308
      %v379 = vunpack.c.h.b16 %v308
      %v380 = vunpack.c.l.b16 %v309
      %v381 = vunpack.c.h.b16 %v309
      %v382 = vpack.c.b16 %v362, %v358
      %v383 = vpack.c.b16 %v363, %v359
      %v384 = vpack.c.b16 %v364, %v360
      %v385 = vpack.c.b16 %v365, %v361
      %v386 = vpack.c.b16 %v370, %v366
      %v387 = vpack.c.b16 %v371, %v367
      %v388 = vpack.c.b16 %v372, %v368
      %v389 = vpack.c.b16 %v373, %v369
      %v390 = vpack.c.b16 %v378, %v374
      %v391 = vpack.c.b16 %v379, %v375
      %v392 = vpack.c.b16 %v380, %v376
      %v393 = vpack.c.b16 %v381, %v377
      %406 = vmatpush.bf16.msra.mxu0 %v273
      %407 = vmatpush.bf16.msra.mxu0 %v272
      %408 = vmatpush.bf16.msra.mxu0 %v271
      %409 = vmatpush.bf16.msra.mxu0 %v270
      %410 = vmatpush.bf16.msra.mxu0 %v269
      %411 = vmatpush.bf16.msra.mxu0 %v268
      %412 = vmatpush.bf16.msra.mxu0 %v267
      %413 = vmatpush.bf16.msra.mxu0 %v266
      %414 = vmatmul.bf16.gmra.mxu0 %v382
      %v415 = vpop.f32.mrf.mxu0
      %v416 = vadd.f32 %v319, %v415
      %v417 = vpop.f32.mrf.mxu0
      %v418 = vadd.f32 %v324, %v417
      %419 = vmatmul.bf16.gmra.mxu0 %v386
      %v420 = vpop.f32.mrf.mxu0
      %v421 = vadd.f32 %v329, %v420
      %v422 = vpop.f32.mrf.mxu0
      %v423 = vadd.f32 %v334, %v422
      %424 = vmatmul.bf16.gmra.mxu0 %v390
      %v425 = vpop.f32.mrf.mxu0
      %v426 = vadd.f32 %v339, %v425
      %v427 = vpop.f32.mrf.mxu0
      %v428 = vadd.f32 %v344, %v427
      %429 = vdwg.mxu0
      %430 = vmatpush.bf16.msra.mxu0 %v281
      %431 = vmatpush.bf16.msra.mxu0 %v280
      %432 = vmatpush.bf16.msra.mxu0 %v279
      %433 = vmatpush.bf16.msra.mxu0 %v278
      %434 = vmatpush.bf16.msra.mxu0 %v277
      %435 = vmatpush.bf16.msra.mxu0 %v276
      %436 = vmatpush.bf16.msra.mxu0 %v275
      %437 = vmatpush.bf16.msra.mxu0 %v274
      %438 = vmatmul.bf16.gmra.mxu0 %v383
      %v439 = vpop.f32.mrf.mxu0
      %v440 = vadd.f32 %v416, %v439
      %v441 = vpop.f32.mrf.mxu0
      %v442 = vadd.f32 %v418, %v441
      %443 = vmatmul.bf16.gmra.mxu0 %v387
      %v444 = vpop.f32.mrf.mxu0
      %v445 = vadd.f32 %v421, %v444
      %v446 = vpop.f32.mrf.mxu0
      %v447 = vadd.f32 %v423, %v446
      %448 = vmatmul.bf16.gmra.mxu0 %v391
      %v449 = vpop.f32.mrf.mxu0
      %v450 = vadd.f32 %v426, %v449
      %v451 = vpop.f32.mrf.mxu0
      %v452 = vadd.f32 %v428, %v451
      %453 = vdwg.mxu0
      %454 = vmatpush.bf16.msra.mxu0 %v289
      %455 = vmatpush.bf16.msra.mxu0 %v288
      %456 = vmatpush.bf16.msra.mxu0 %v287
      %457 = vmatpush.bf16.msra.mxu0 %v286
      %458 = vmatpush.bf16.msra.mxu0 %v285
      %459 = vmatpush.bf16.msra.mxu0 %v284
      %460 = vmatpush.bf16.msra.mxu0 %v283
      %461 = vmatpush.bf16.msra.mxu0 %v282
      %462 = vmatmul.bf16.gmra.mxu0 %v384
      %v463 = vpop.f32.mrf.mxu0
      %v464 = vadd.f32 %v440, %v463
      %v465 = vpop.f32.mrf.mxu0
      %v466 = vadd.f32 %v442, %v465
      %467 = vmatmul.bf16.gmra.mxu0 %v388
      %v468 = vpop.f32.mrf.mxu0
      %v469 = vadd.f32 %v445, %v468
      %v470 = vpop.f32.mrf.mxu0
      %v471 = vadd.f32 %v447, %v470
      %472 = vmatmul.bf16.gmra.mxu0 %v392
      %v473 = vpop.f32.mrf.mxu0
      %v474 = vadd.f32 %v450, %v473
      %v475 = vpop.f32.mrf.mxu0
      %v476 = vadd.f32 %v452, %v475
      %477 = vdwg.mxu0
      %478 = vmatpush.bf16.msra.mxu0 %v297
      %479 = vmatpush.bf16.msra.mxu0 %v296
      %480 = vmatpush.bf16.msra.mxu0 %v295
      %481 = vmatpush.bf16.msra.mxu0 %v294
      %482 = vmatpush.bf16.msra.mxu0 %v293
      %483 = vmatpush.bf16.msra.mxu0 %v292
      %484 = vmatpush.bf16.msra.mxu0 %v291
      %485 = vmatpush.bf16.msra.mxu0 %v290
      %486 = vmatmul.bf16.gmra.mxu0 %v385
      %v487 = vpop.f32.mrf.mxu0
      %v488 = vadd.f32 %v464, %v487
      %v489 = vpop.f32.mrf.mxu0
      %v490 = vadd.f32 %v466, %v489
      %491 = vmatmul.bf16.gmra.mxu0 %v389
      %v492 = vpop.f32.mrf.mxu0
      %v493 = vadd.f32 %v469, %v492
      %v494 = vpop.f32.mrf.mxu0
      %v495 = vadd.f32 %v471, %v494
      %496 = vmatmul.bf16.gmra.mxu0 %v393
      %v497 = vpop.f32.mrf.mxu0
      %v498 = vadd.f32 %v474, %v497
      %v499 = vpop.f32.mrf.mxu0
      %v500 = vadd.f32 %v476, %v499
      %501 = vdwg.mxu0
      %v502 = vlaneseq
      %v503 = vshrl.u32 %v502, 7
      %v504 = vadd.s32 %v503, 8
      %v505 = vadd.s32 %v503, 16
      %v506 = vadd.s32 %v503, 24
      %v507 = vadd.s32 %v503, 32
      %v508 = vadd.s32 %v503, 40
      %vm509 = vcmp.ge.s32.totalorder %v503, 36
      %vm510 = vcmp.ge.s32.totalorder %v504, 36
      %vm511 = vcmp.ge.s32.totalorder %v505, 36
      %vm512 = vcmp.ge.s32.totalorder %v506, 36
      %vm513 = vcmp.ge.s32.totalorder %v507, 36
      %vm514 = vcmp.ge.s32.totalorder %v508, 36
      %vm515 = vcmp.lt.s32.totalorder %v503, 45
      %vm516 = vcmp.lt.s32.totalorder %v504, 45
      %vm517 = vcmp.lt.s32.totalorder %v505, 45
      %vm518 = vcmp.lt.s32.totalorder %v506, 45
      %vm519 = vcmp.lt.s32.totalorder %v507, 45
      %vm520 = vcmp.lt.s32.totalorder %v508, 45
      %vm521 = vmand %vm509, %vm515
      %vm522 = vmand %vm510, %vm516
      %vm523 = vmand %vm511, %vm517
      %vm524 = vmand %vm512, %vm518
      %vm525 = vmand %vm513, %vm519
      %vm526 = vmand %vm514, %vm520
      %v527 = vxor.u32 %v488, 2147483648
      %v528 = vxor.u32 %v490, 2147483648
      %v529 = vxor.u32 %v493, 2147483648
      %v530 = vxor.u32 %v495, 2147483648
      %v531 = vxor.u32 %v498, 2147483648
      %v532 = vxor.u32 %v500, 2147483648
      %v533 = vmul.f32 %v527, 1.442695
      %v534 = vpow.pop %v533
      %v535 = vmul.f32 %v528, 1.442695
      %v536 = vpow.pop %v535
      %v537 = vmul.f32 %v529, 1.442695
      %v538 = vpow.pop %v537
      %v539 = vmul.f32 %v530, 1.442695
      %v540 = vpow.pop %v539
      %v541 = vmul.f32 %v531, 1.442695
      %v542 = vpow.pop %v541
      %v543 = vmul.f32 %v532, 1.442695
      %v544 = vpow.pop %v543
      %v545 = vadd.f32 %v534, 1.0
      %v546 = vadd.f32 %v536, 1.0
      %v547 = vadd.f32 %v538, 1.0
      %v548 = vadd.f32 %v540, 1.0
      %v549 = vadd.f32 %v542, 1.0
      %v550 = vadd.f32 %v544, 1.0
      %v551 = vrcp.pop %v545
      %v552 = vmul.f32 %v545, %v551
      %v553 = vsub.f32 1.0, %v552
      %v554 = vmul.f32 %v551, %v553
      %v555 = vadd.f32 %v551, %v554
      %vm556 = vweird.f32 %v545
      %vm557 = vweird.f32 %v551
      %vm558 = vmor %vm556, %vm557
      %v559 = vsel %vm558, %v551, %v555
      %v560 = vand.u32 2147483647, %v545
      %vm561 = vcmp.eq.f32.partialorder %v560, 8.507059e+37
      %v562 = vand.u32 %v545, 2147483648
      %v563 = vor.u32 1.1754944e-38, %v562
      %v564 = vsel %vm561, %v563, %v559
      %v565 = vmul.f32 1.0, %v564
      %v566 = vrcp.pop %v546
      %v567 = vmul.f32 %v546, %v566
      %v568 = vsub.f32 1.0, %v567
      %v569 = vmul.f32 %v566, %v568
      %v570 = vadd.f32 %v566, %v569
      %vm571 = vweird.f32 %v546
      %vm572 = vweird.f32 %v566
      %vm573 = vmor %vm571, %vm572
      %v574 = vsel %vm573, %v566, %v570
      %v575 = vand.u32 2147483647, %v546
      %vm576 = vcmp.eq.f32.partialorder %v575, 8.507059e+37
      %v577 = vand.u32 %v546, 2147483648
      %v578 = vor.u32 1.1754944e-38, %v577
      %v579 = vsel %vm576, %v578, %v574
      %v580 = vmul.f32 1.0, %v579
      %v581 = vrcp.pop %v547
      %v582 = vmul.f32 %v547, %v581
      %v583 = vsub.f32 1.0, %v582
      %v584 = vmul.f32 %v581, %v583
      %v585 = vadd.f32 %v581, %v584
      %vm586 = vweird.f32 %v547
      %vm587 = vweird.f32 %v581
      %vm588 = vmor %vm586, %vm587
      %v589 = vsel %vm588, %v581, %v585
      %v590 = vand.u32 2147483647, %v547
      %vm591 = vcmp.eq.f32.partialorder %v590, 8.507059e+37
      %v592 = vand.u32 %v547, 2147483648
      %v593 = vor.u32 1.1754944e-38, %v592
      %v594 = vsel %vm591, %v593, %v589
      %v595 = vmul.f32 1.0, %v594
      %v596 = vrcp.pop %v548
      %v597 = vmul.f32 %v548, %v596
      %v598 = vsub.f32 1.0, %v597
      %v599 = vmul.f32 %v596, %v598
      %v600 = vadd.f32 %v596, %v599
      %vm601 = vweird.f32 %v548
      %vm602 = vweird.f32 %v596
      %vm603 = vmor %vm601, %vm602
      %v604 = vsel %vm603, %v596, %v600
      %v605 = vand.u32 2147483647, %v548
      %vm606 = vcmp.eq.f32.partialorder %v605, 8.507059e+37
      %v607 = vand.u32 %v548, 2147483648
      %v608 = vor.u32 1.1754944e-38, %v607
      %v609 = vsel %vm606, %v608, %v604
      %v610 = vmul.f32 1.0, %v609
      %v611 = vrcp.pop %v549
      %v612 = vmul.f32 %v549, %v611
      %v613 = vsub.f32 1.0, %v612
      %v614 = vmul.f32 %v611, %v613
      %v615 = vadd.f32 %v611, %v614
      %vm616 = vweird.f32 %v549
      %vm617 = vweird.f32 %v611
      %vm618 = vmor %vm616, %vm617
      %v619 = vsel %vm618, %v611, %v615
      %v620 = vand.u32 2147483647, %v549
      %vm621 = vcmp.eq.f32.partialorder %v620, 8.507059e+37
      %v622 = vand.u32 %v549, 2147483648
      %v623 = vor.u32 1.1754944e-38, %v622
      %v624 = vsel %vm621, %v623, %v619
      %v625 = vmul.f32 1.0, %v624
      %v626 = vrcp.pop %v550
      %v627 = vmul.f32 %v550, %v626
      %v628 = vsub.f32 1.0, %v627
      %v629 = vmul.f32 %v626, %v628
      %v630 = vadd.f32 %v626, %v629
      %vm631 = vweird.f32 %v550
      %vm632 = vweird.f32 %v626
      %vm633 = vmor %vm631, %vm632
      %v634 = vsel %vm633, %v626, %v630
      %v635 = vand.u32 2147483647, %v550
      %vm636 = vcmp.eq.f32.partialorder %v635, 8.507059e+37
      %v637 = vand.u32 %v550, 2147483648
      %v638 = vor.u32 1.1754944e-38, %v637
      %v639 = vsel %vm636, %v638, %v634
      %v640 = vmul.f32 1.0, %v639
      %v641 = vsel %vm521, %v565, %v488
      %v642 = vsel %vm522, %v580, %v490
      %v643 = vsel %vm523, %v595, %v493
      %v644 = vsel %vm524, %v610, %v495
      %v645 = vsel %vm525, %v625, %v498
      %v646 = vsel %vm526, %v640, %v500
      %647 = vst [vmem:[%s201] sm:$0xff] %v641
      %648 = vst [vmem:[%s201 + $0x8] sm:$0xff] %v642
      %649 = vst [vmem:[%s201 + $0x10] sm:$0xff] %v643
      %650 = vst [vmem:[%s201 + $0x18] sm:$0xff] %v644
      %651 = vst [vmem:[%s201 + $0x20] sm:$0xff] %v645
      %652 = vst [vmem:[%s201 + $0x28] sm:$0xff] %v646
      %p653 = scmp.lt.s32.totalorder %s18, 1
      %s654 = scalar_select %p653, %s18, 1
      %p655 = scmp.lt.s32.totalorder %s19, 0
      %s656 = scalar_select %p655, %s19, 0
      %s657 = smul.addr %s654, 6
      %s658 = sadd.s32 %s656, %s657
      %s659 = smul.addr %s658, 8
      %s660 = scalar_lea.vmem %s3, %s659
      // Predicated region
      $region33: #{rpn_forward.1} parent=31 // pred_check
        %p661 = pneg %p116
      $region34: #{rpn_forward.1} parent=31 // pred_check_branch
        %663 = sbr.rel (%p661) target = $region36
      $region35: #{rpn_forward.1} parent=31 // pred_region
        _
      $region36: #{rpn_forward.1} parent=31 // pred_fallthru
        _
    $region32: #{rpn_forward.1} parent=5 // pred_fallthru
      _
    %p664 = scmp.le.s32.totalorder 2, %s9
    // Predicated region
    $region37: #{rpn_forward.1} parent=5 // pred_check
      %p665 = pneg %p664
    $region38: #{rpn_forward.1} parent=5 // pred_check_branch
      %667 = sbr.rel (%p665) target = $region40
    $region39: #{rpn_forward.1} parent=5 // pred_region
      %s668 = ssub.s32 %s9, 2
      // Predicated region
      $region41: #{rpn_forward.1} parent=39 // pred_check
        %p669 = pneg %p122
      $region42: #{rpn_forward.1} parent=39 // pred_check_branch
        %671 = sbr.rel (%p669) target = $region44
      $region43: #{rpn_forward.1} parent=39 // pred_region
        %p672 = scmp.lt.s32.totalorder %s20, 1
        %s673 = scalar_select %p672, %s20, 1
        %p674 = scmp.lt.s32.totalorder %s21, 0
        %s675 = scalar_select %p674, %s21, 0
        %s676 = smul.addr %s673, 6
        %s677 = sadd.s32 %s675, %s676
        %s678 = smul.addr %s677, 8
        %s679 = scalar_lea.vmem %s3, %s678
      $region44: #{rpn_forward.1} parent=39 // pred_fallthru
        _
    $region40: #{rpn_forward.1} parent=5 // pred_fallthru
      _
  $region6: #{rpn_forward.1} parent=0 // loop_footer
    %s13 = sadd.s32 1, %s9
  $region7: #{rpn_forward.1} parent=0 // loop_footer_branch
    %8 = sbr.rel target = $region3
  $region8: #{rpn_forward.1} parent=0 // loop_exit
    _

</llo_original>
